<compile_context>
chip_gen: v7x
topology: tpu7x:2x2x1
jax: 0.10.0
libtpu: 0.0.40
codegen_flags: <defaults>
</compile_context>

<pallas_src>
import jax
import jax.numpy as jnp
from jax.experimental import pallas as pl
from jax.experimental.pallas import tpu as pltpu


# ----------------------------------------------------------------------------
# Pallas kernel: scalar-path copy of the global temperature parameter.
# (This *is* the entire forward compute of Global_T: `x.clone()`.)
# ----------------------------------------------------------------------------
def _global_t_kernel(t_ref, o_ref):
    # Both refs are (1,) f32 in SMEM: one scalar load, one scalar store.
    o_ref[0] = t_ref[0]


def _global_t_forward_pallas(global_T):
    # global_T: (1,) f32. Whole array is placed in SMEM (scalar path), so the
    # (8, 128) vector-tiling constraint never applies and no lane padding /
    # masked vector stores are emitted.
    return pl.pallas_call(
        _global_t_kernel,
        out_shape=jax.ShapeDtypeStruct(global_T.shape, global_T.dtype),
        in_specs=[pl.BlockSpec(memory_space=pltpu.MemorySpace.SMEM)],
        out_specs=pl.BlockSpec(memory_space=pltpu.MemorySpace.SMEM),
    )(global_T)


# ----------------------------------------------------------------------------
# Gradient reversal: identity forward (via the Pallas copy kernel), backward
# multiplies the upstream gradient by lambda_ (PyTorch: dx = lambda_ * grads;
# no gradient w.r.t. lambda_ -> zero cotangent).
# ----------------------------------------------------------------------------
@jax.custom_vjp
def gradient_reversal(x, lambda_):
    return _global_t_forward_pallas(x)


def _grl_fwd(x, lambda_):
    return _global_t_forward_pallas(x), lambda_


def _grl_bwd(lambda_, g):
    dx = lambda_ * g
    # PyTorch returns None for lambda_'s grad; emit a structurally-matching
    # zero cotangent so this is valid whether lambda_ is a float or an array.
    dlambda = jnp.zeros_like(lambda_)
    return (dx, dlambda)


gradient_reversal.defvjp(_grl_fwd, _grl_bwd)


# ----------------------------------------------------------------------------
# Global_T module equivalent.
# ----------------------------------------------------------------------------
class GlobalT:
    def __init__(self):
        # nn.Parameter(torch.ones(1)) -> deterministic init of ones, shape (1,)
        self.global_T = jnp.ones((1,), dtype=jnp.float32)

    def __call__(self, fake_input1, fake_input2, lambda_):
        # fake_input1 / fake_input2 are intentionally unused (as in PyTorch),
        # and are never handed to pallas_call (no dead DMAs).
        return gradient_reversal(self.global_T, lambda_)


if __name__ == "__main__":
    key = jax.random.PRNGKey(0)
    k1, k2 = jax.random.split(key)

    # Small NCHW inputs consistent with a segmentation feature map.
    fake_input1 = jax.random.normal(k1, (2, 4, 16, 16), dtype=jnp.float32)
    fake_input2 = jax.random.normal(k2, (2, 4, 16, 16), dtype=jnp.float32)
    lambda_ = 0.5

    model = GlobalT()
    out = model(fake_input1, fake_input2, lambda_)
    out = jax.block_until_ready(out)

    assert out.shape == (1,)
    assert out.dtype == jnp.float32
    assert bool(jnp.allclose(out, jnp.ones((1,), jnp.float32)))

    # Sanity check of the reversal backward semantics (dx = lambda_ * g).
    grad_fn = jax.grad(lambda t: jnp.sum(gradient_reversal(t, lambda_)))
    g = jax.block_until_ready(grad_fn(model.global_T))
    assert bool(jnp.allclose(g, jnp.full((1,), lambda_, jnp.float32)))

    print("KERNEL_OK")
</pallas_src>

<mosaic_0001>
module attributes {stable_mosaic.version = 11 : i64} {
  func.func @_global_t_kernel(%arg0: memref<1xf32, #tpu.memory_space<smem>>, %arg1: memref<1xf32, #tpu.memory_space<smem>>) attributes {dimension_semantics = [], scalar_prefetch = 0 : i64, scratch_operands = 0 : i64, tpu.core_type = #tpu.core_type<tc>} {
    %c0 = arith.constant 0 : index
    %0 = memref.load %arg0[%c0] : memref<1xf32, #tpu.memory_space<smem>>
    %c0_0 = arith.constant 0 : index
    %1 = memref.load %arg1[%c0_0] : memref<1xf32, #tpu.memory_space<smem>>
    memref.store %0, %arg1[%c0_0] : memref<1xf32, #tpu.memory_space<smem>>
    return
  }
}

</mosaic_0001>

<llo_original>
// kernel: tpu_custom_call.1
$region0: #{tpu_custom_call.1}
  #allocation0 [shape = 'u32[]', space=smem, size = 0x4, offset = 0x4, fixed_abs, tag = 'smem constant byte address 0x4 - core index']
  #allocation1 [shape = 'u32[144,128]{1,0:T(1,128)}', space=vmem, size = 0x12000, scoped, tag = 'internal scratch']
  #allocation2 [shape = 'f32[1]{0:T(128)S(6)}', space=smem, size = 0x200, scoped, tag = 'scoped memory for tpu_custom_call.1']
  %s0 = inlined_call_operand.<no memory space> [shape: f32[1], index: 0, kind: input, shape index: {}]
  %s1 = inlined_call_operand.hbm [shape: f32[1], index: 1, kind: output, shape index: {}]
  %s2 = sld [smem:[#allocation0]]
  $region14: #{tpu_custom_call.1} parent=0
    _
  %s4 = ssub.s32 1, %s2
  %s5 = scalar_select 0, %s4, %s2
  %6 = sst [smem:[#allocation2]] %s0
  $region1: #{tpu_custom_call.1} parent=0
    #allocation3 [shape = 'u8[512]{0}', space=smem, size = 0x200, scoped, tag = 'output window, operand 0, single buffered']
    #allocation4 [shape = 's32[1]{0}', space=sflag, size = 0x4, scoped, tag = 'scoped memory for tpu_custom_call.1']
    %7 = vsyncpa [#allocation4], 0
    // Predicated region
    $region2: #{tpu_custom_call.1} parent=1 // pred_check
      _
    $region3: #{tpu_custom_call.1} parent=1 // pred_check_branch
      %9 = sbr.rel (0) target = $region5
    $region4: #{tpu_custom_call.1} parent=1 // pred_region
      _
    $region5: #{tpu_custom_call.1} parent=1 // pred_fallthru
      _
    %s10 = sld [smem:[#allocation2]]
    %s11 = scalar_lea.smem [#allocation3], 0
    %12 = sst [smem:[%s11]] %s10
    // Predicated region
    $region6: #{tpu_custom_call.1} parent=1 // pred_check
      _
    $region7: #{tpu_custom_call.1} parent=1 // pred_check_branch
      %14 = sbr.rel (0) target = $region9
    $region8: #{tpu_custom_call.1} parent=1 // pred_region
      %s16 = ssub.s32 16, 16
      %17 = vsyncadd [#allocation4], %s16
      %20 = dma.smem_to_hbm [#allocation3], 16, %s1, [#allocation4]
    $region9: #{tpu_custom_call.1} parent=1 // pred_fallthru
      _
    // Predicated region
    $region10: #{tpu_custom_call.1} parent=1 // pred_check
      _
    $region11: #{tpu_custom_call.1} parent=1 // pred_check_branch
      %22 = sbr.rel (0) target = $region13
    $region12: #{tpu_custom_call.1} parent=1 // pred_region
      %23 = dma.done [#allocation4], 16
    $region13: #{tpu_custom_call.1} parent=1 // pred_fallthru
      _
    %24 = sfence
    %25 = vsyncpa [#allocation4], 1

</llo_original>
